<compile_context>
chip_gen: v6e
topology: v6e:2x2x1
jax: 0.10.0
libtpu: 0.0.40
codegen_flags: <defaults>
</compile_context>

<pallas_src>
import functools

import jax
import jax.numpy as jnp
from jax.experimental import pallas as pl
from jax.experimental.pallas import tpu as pltpu

_EPS = 1e-8  # matches torch.nn.functional.cosine_similarity default eps
# TODO(synk): some torch versions clamp the norm *product* to eps instead of
#             each norm; the per-norm clamp below matches the prior reference.


def _semantic_loss_kernel(*refs, num_levels):
    # refs layout:
    #   [0 .. L]          x_refs: (B, tk)    original (0) + abstraction levels
    #   [L+1]             w_ref:  (tk, f_blk) CLIP projection tile
    #   [L+2]             sq_ref: (1, B, L+1) f32  partial ||feat||^2 per row
    #   [L+3]             num_ref:(1, B, L)   f32  partial orig·abst per row
    #   [L+4]             acc_ref:(L+1, B, f_blk) f32 feature accumulator
    n_img = num_levels + 1
    x_refs = refs[:n_img]
    w_ref = refs[n_img]
    sq_ref = refs[n_img + 1]
    num_ref = refs[n_img + 2]
    acc_ref = refs[n_img + 3]

    k = pl.program_id(1)

    @pl.when(k == 0)
    def _():
        acc_ref[...] = jnp.zeros_like(acc_ref)

    # Cast tiles to bf16 on-chip (VPU work hidden under the W DMA); one MXU dot
    # per level into its own accumulator slice.  The kernel is HBM-bound on the
    # W stream, so the small per-dot M is irrelevant.
    w = w_ref[...].astype(jnp.bfloat16)
    for lvl in range(n_img):  # static, small
        acc_ref[lvl] += jnp.dot(x_refs[lvl][...].astype(jnp.bfloat16), w,
                                preferred_element_type=jnp.float32)

    @pl.when(k == pl.num_programs(1) - 1)
    def _():
        # Per-F-block partial reductions only (lane-axis sums, 2-D throughout);
        # the tiny (L, B) sqrt / eps / cosine / mean combine happens in JAX.
        orig = acc_ref[0]                                           # (B, f_blk)
        sq_cols = [jnp.sum(orig * orig, axis=-1, keepdims=True)]    # (B, 1)
        num_cols = []
        for lvl in range(num_levels):
            abst = acc_ref[lvl + 1]                                 # (B, f_blk)
            sq_cols.append(jnp.sum(abst * abst, axis=-1, keepdims=True))
            num_cols.append(jnp.sum(orig * abst, axis=-1, keepdims=True))
        sq_ref[0] = jnp.concatenate(sq_cols, axis=-1)               # (B, L+1)
        num_ref[0] = jnp.concatenate(num_cols, axis=-1)             # (B, L)


def _vmem_budget_bytes():
    """~40 MiB working budget on v5e/v6e (128 MiB physical) and v7x
    (64 MiB physical, leave headroom for compiler scratch)."""
    try:
        cap = int(pltpu.get_tpu_info().vmem_capacity_bytes)
    except Exception:
        cap = 64 << 20  # conservative fallback (v7x physical)
    return min(40 << 20, (cap * 5) // 8)


def _default_num_f_blocks(f_dim):
    """Split F into 2 'parallel' blocks only on parts with 2 TensorCores per
    chip (v4 / v5p / v7x); on 1-TC parts a split just re-streams x for no gain."""
    try:
        kind = jax.devices()[0].device_kind.lower()
    except Exception:
        kind = ""
    two_core = any(t in kind for t in ("v4", "v5p", "v7", "7x"))
    if two_core and f_dim % 256 == 0:
        return 2
    return 1


def _pick_k_tile(d_pad, f_blk, batch, n_img, x_bytes, w_bytes, budget_bytes):
    """Largest lane-aligned multiple of 128 dividing d_pad whose default-depth
    (2x) double-buffered tiles plus the resident f32 accumulator fit the VMEM
    budget.  Scans ALL 128-multiples (not just powers of two)."""
    b_sub = ((batch + 7) // 8) * 8           # sublane-padded rows per x tile
    fixed = n_img * b_sub * f_blk * 4        # resident f32 accumulator
    best = None
    tk = 128
    while tk <= d_pad:
        if d_pad % tk == 0:
            use = 2 * (n_img * b_sub * tk * x_bytes + tk * f_blk * w_bytes) + fixed
            if use <= budget_bytes:
                best = tk
        tk += 128
    return best if best is not None else 128


def semantic_loss(abstractions, original, clip_weight, *, normalize=True,
                  k_tile=None, num_f_blocks=None):
    """abstractions: list of (B, C, H, W); original: (B, C, H, W);
    clip_weight: (C*H*W, F) synthetic CLIP projection.  Returns scalar f32."""
    b = original.shape[0]
    d = 1
    for s in original.shape[1:]:
        d *= s
    assert clip_weight.shape[0] == d, (clip_weight.shape, d)
    f_dim = clip_weight.shape[1]
    num_levels = len(abstractions)
    n_img = num_levels + 1

    # Flatten to (B, D): free for contiguous inputs, no extra HBM pass.
    xs = [original.reshape(b, d)] + [a.reshape(b, d) for a in abstractions]

    # Pad the contraction dim to a lane multiple (numerically exact).
    d_pad = ((d + 127) // 128) * 128
    w_mat = clip_weight
    if d_pad != d:
        # Costs one extra HBM pass; a caller with lane-aligned D avoids it.
        pad = d_pad - d
        xs = [jnp.pad(x, ((0, 0), (0, pad))) for x in xs]
        w_mat = jnp.pad(w_mat, ((0, pad), (0, 0)))

    nf = _default_num_f_blocks(f_dim) if num_f_blocks is None else num_f_blocks
    if nf < 1 or f_dim % (nf * 128) != 0:
        nf = 1
    f_blk = f_dim // nf

    x_bytes = xs[0].dtype.itemsize
    w_bytes = w_mat.dtype.itemsize
    vmem_limit = _vmem_budget_bytes()
    if k_tile is None:
        tk = _pick_k_tile(d_pad, f_blk, b, n_img, x_bytes, w_bytes,
                          budget_bytes=(vmem_limit * 9) // 10)
    else:
        tk = k_tile
    assert d_pad % tk == 0 and tk % 128 == 0, (d_pad, tk)
    nk = d_pad // tk
    grid = (nf, nk)

    in_specs = (
        [pl.BlockSpec((b, tk), lambda j, k: (0, k)) for _ in range(n_img)]
        + [pl.BlockSpec((tk, f_blk), lambda j, k: (k, j))]
    )
    out_specs = [
        pl.BlockSpec((1, b, n_img), lambda j, k: (j, 0, 0)),
        pl.BlockSpec((1, b, num_levels), lambda j, k: (j, 0, 0)),
    ]
    out_shape = (
        jax.ShapeDtypeStruct((nf, b, n_img), jnp.float32),
        jax.ShapeDtypeStruct((nf, b, num_levels), jnp.float32),
    )

    cost = pl.CostEstimate(
        flops=2 * n_img * b * d_pad * f_dim,
        transcendentals=0,
        bytes_accessed=(d_pad * f_dim * w_bytes
                        + nf * n_img * b * d_pad * x_bytes
                        + nf * b * (n_img + num_levels) * 4),
    )

    sq_p, num_p = pl.pallas_call(
        functools.partial(_semantic_loss_kernel, num_levels=num_levels),
        out_shape=out_shape,
        grid_spec=pltpu.PrefetchScalarGridSpec(
            num_scalar_prefetch=0,
            grid=grid,
            in_specs=in_specs,
            out_specs=out_specs,
            # Default double-buffer depth kept: extra VMEM goes to larger tk.
            scratch_shapes=[pltpu.VMEM((n_img, b, f_blk), jnp.float32)],
        ),
        compiler_params=pltpu.CompilerParams(
            dimension_semantics=("parallel", "arbitrary"),  # F-split x K-reduce
            vmem_limit_bytes=vmem_limit,
        ),
        cost_estimate=cost,
    )(*xs, w_mat)

    # Tiny combine in plain JAX (a few hundred flops at most).
    sq = jnp.sum(sq_p, axis=0)          # (B, L+1) full ||feat||^2
    num = jnp.sum(num_p, axis=0)        # (B, L)   full orig·abst
    norms = jnp.sqrt(sq)
    if normalize:
        # Module divides by the raw norm (no eps); cosine_similarity's
        # denominator on unit-norm rows is 1 -> sim = num / (||o||*||a||).
        den = norms[:, :1] * norms[:, 1:]
    else:
        cn = jnp.maximum(norms, _EPS)   # cosine_similarity per-norm eps clamp
        den = cn[:, :1] * cn[:, 1:]
    sim = num / den                      # (B, L)
    return jnp.mean(1.0 - jnp.mean(sim, axis=0))


def _reference(abstractions, original, clip_weight, normalize=True):
    """Pure-JAX reference mirroring the PyTorch forward (bf16 matmul, f32 rest)."""
    b = original.shape[0]
    d = clip_weight.shape[0]
    wb = clip_weight.astype(jnp.bfloat16)

    def enc(img):
        return jnp.dot(img.reshape(b, d).astype(jnp.bfloat16), wb,
                       preferred_element_type=jnp.float32)

    of = enc(original)
    if normalize:
        of = of / jnp.linalg.norm(of, axis=-1, keepdims=True)
    total = 0.0
    for a in abstractions:
        af = enc(a)
        if normalize:
            af = af / jnp.linalg.norm(af, axis=-1, keepdims=True)
        num = jnp.sum(of * af, axis=-1)
        den = (jnp.maximum(jnp.linalg.norm(of, axis=-1), _EPS)
               * jnp.maximum(jnp.linalg.norm(af, axis=-1), _EPS))
        total = total + (1.0 - jnp.mean(num / den))
    return total / len(abstractions)


if __name__ == "__main__":
    key = jax.random.PRNGKey(0)
    B, C, H, W = 2, 4, 16, 16
    F_DIM = 128  # synthetic CLIP feature dim (lane-aligned)
    L = 3        # number of abstraction levels
    D = C * H * W

    k_orig, k_w, *k_abst = jax.random.split(key, 2 + L)
    original = jax.random.normal(k_orig, (B, C, H, W), dtype=jnp.float32)
    abstractions = [
        original + 0.1 * (i + 1) * jax.random.normal(k_abst[i], (B, C, H, W),
                                                     jnp.float32)
        for i in range(L)
    ]
    clip_weight = jax.random.normal(k_w, (D, F_DIM), dtype=jnp.float32) / jnp.sqrt(D)

    # k_tile=256 -> 4-step K-tiled pipeline even at this small demo size.
    loss = semantic_loss(abstractions, original, clip_weight,
                         normalize=True, k_tile=256)
    loss = jax.block_until_ready(loss)

    ref = _reference(abstractions, original, clip_weight, normalize=True)
    assert jnp.allclose(loss, ref, rtol=1e-3, atol=1e-5), (loss, ref)

    print("KERNEL_OK")
</pallas_src>

<mosaic_0001>
module attributes {stable_mosaic.version = 11 : i64} {
  func.func @_semantic_loss_kernel(%arg0: i32, %arg1: i32, %arg2: memref<2x256xf32, #tpu.memory_space<vmem>>, %arg3: memref<2x256xf32, #tpu.memory_space<vmem>>, %arg4: memref<2x256xf32, #tpu.memory_space<vmem>>, %arg5: memref<2x256xf32, #tpu.memory_space<vmem>>, %arg6: memref<256x128xf32, #tpu.memory_space<vmem>>, %arg7: memref<1x2x4xf32, #tpu.memory_space<vmem>>, %arg8: memref<1x2x3xf32, #tpu.memory_space<vmem>>, %arg9: memref<4x2x128xf32, #tpu.memory_space<vmem>>) attributes {dimension_semantics = [#tpu.dimension_semantics<parallel>, #tpu.dimension_semantics<arbitrary>], iteration_bounds = array<i64: 1, 4>, scalar_prefetch = 0 : i64, scratch_operands = 1 : i64, tpu.core_type = #tpu.core_type<tc>, window_params = [{transform_indices = @transform_0, window_bounds = array<i64: 2, 256>}, {transform_indices = @transform_1, window_bounds = array<i64: 2, 256>}, {transform_indices = @transform_2, window_bounds = array<i64: 2, 256>}, {transform_indices = @transform_3, window_bounds = array<i64: 2, 256>}, {transform_indices = @transform_4, window_bounds = array<i64: 256, 128>}, {transform_indices = @transform_5, window_bounds = array<i64: 1, 2, 4>}, {transform_indices = @transform_6, window_bounds = array<i64: 1, 2, 3>}]} {
    %c0_i32 = arith.constant 0 : i32
    %0 = arith.cmpi eq, %arg1, %c0_i32 : i32
    %1 = arith.extui %0 : i1 to i32
    %c0_i32_0 = arith.constant 0 : i32
    %2 = arith.cmpi ne, %1, %c0_i32_0 : i32
    scf.if %2 {
      %cst_35 = arith.constant 0.000000e+00 : f32
      %44 = vector.broadcast %cst_35 : f32 to vector<4x2x128xf32>
      %c0_36 = arith.constant 0 : index
      %c0_37 = arith.constant 0 : index
      %c0_38 = arith.constant 0 : index
      %45 = vector.load %arg9[%c0_36, %c0_37, %c0_38] : memref<4x2x128xf32, #tpu.memory_space<vmem>>, vector<4x2x128xf32>
      tpu.vector_store %arg9[%c0_36, %c0_37, %c0_38], %44 {strides = array<i32>} : memref<4x2x128xf32, #tpu.memory_space<vmem>>, vector<4x2x128xf32>,
    } else {
    }
    %c0 = arith.constant 0 : index
    %c0_1 = arith.constant 0 : index
    %3 = vector.load %arg6[%c0, %c0_1] : memref<256x128xf32, #tpu.memory_space<vmem>>, vector<256x128xf32>
    %4 = arith.truncf %3 : vector<256x128xf32> to vector<256x128xbf16>
    %c0_2 = arith.constant 0 : index
    %c0_3 = arith.constant 0 : index
    %c0_4 = arith.constant 0 : index
    %5 = vector.load %arg9[%c0_2, %c0_3, %c0_4] : memref<4x2x128xf32, #tpu.memory_space<vmem>>, vector<1x2x128xf32>
    %6 = vector.shape_cast %5 : vector<1x2x128xf32> to vector<2x128xf32>
    %c0_5 = arith.constant 0 : index
    %c0_6 = arith.constant 0 : index
    %7 = vector.load %arg2[%c0_5, %c0_6] : memref<2x256xf32, #tpu.memory_space<vmem>>, vector<2x256xf32>
    %8 = arith.truncf %7 : vector<2x256xf32> to vector<2x256xbf16>
    %cst = arith.constant dense<0.000000e+00> : vector<2x128xf32>
    %9 = tpu.matmul %8, %4, %cst {dimension_numbers = #tpu.dot_dimension_numbers<[1], [0], [0], [1], [0, 0, 1, 1], [], []>} : vector<2x256xbf16>, vector<256x128xbf16>, vector<2x128xf32> -> vector<2x128xf32>
    %10 = arith.addf %6, %9 : vector<2x128xf32>
    %c0_7 = arith.constant 0 : index
    %c0_8 = arith.constant 0 : index
    %c0_9 = arith.constant 0 : index
    %11 = vector.load %arg9[%c0_7, %c0_8, %c0_9] : memref<4x2x128xf32, #tpu.memory_space<vmem>>, vector<1x2x128xf32>
    %12 = vector.shape_cast %11 : vector<1x2x128xf32> to vector<2x128xf32>
    %13 = vector.shape_cast %10 : vector<2x128xf32> to vector<1x2x128xf32>
    tpu.vector_store %arg9[%c0_7, %c0_8, %c0_9], %13 {strides = array<i32>} : memref<4x2x128xf32, #tpu.memory_space<vmem>>, vector<1x2x128xf32>,
    %c1 = arith.constant 1 : index
    %c0_10 = arith.constant 0 : index
    %c0_11 = arith.constant 0 : index
    %14 = vector.load %arg9[%c1, %c0_10, %c0_11] : memref<4x2x128xf32, #tpu.memory_space<vmem>>, vector<1x2x128xf32>
    %15 = vector.shape_cast %14 : vector<1x2x128xf32> to vector<2x128xf32>
    %c0_12 = arith.constant 0 : index
    %c0_13 = arith.constant 0 : index
    %16 = vector.load %arg3[%c0_12, %c0_13] : memref<2x256xf32, #tpu.memory_space<vmem>>, vector<2x256xf32>
    %17 = arith.truncf %16 : vector<2x256xf32> to vector<2x256xbf16>
    %cst_14 = arith.constant dense<0.000000e+00> : vector<2x128xf32>
    %18 = tpu.matmul %17, %4, %cst_14 {dimension_numbers = #tpu.dot_dimension_numbers<[1], [0], [0], [1], [0, 0, 1, 1], [], []>} : vector<2x256xbf16>, vector<256x128xbf16>, vector<2x128xf32> -> vector<2x128xf32>
    %19 = arith.addf %15, %18 : vector<2x128xf32>
    %c1_15 = arith.constant 1 : index
    %c0_16 = arith.constant 0 : index
    %c0_17 = arith.constant 0 : index
    %20 = vector.load %arg9[%c1_15, %c0_16, %c0_17] : memref<4x2x128xf32, #tpu.memory_space<vmem>>, vector<1x2x128xf32>
    %21 = vector.shape_cast %20 : vector<1x2x128xf32> to vector<2x128xf32>
    %22 = vector.shape_cast %19 : vector<2x128xf32> to vector<1x2x128xf32>
    tpu.vector_store %arg9[%c1_15, %c0_16, %c0_17], %22 {strides = array<i32>} : memref<4x2x128xf32, #tpu.memory_space<vmem>>, vector<1x2x128xf32>,
    %c2 = arith.constant 2 : index
    %c0_18 = arith.constant 0 : index
    %c0_19 = arith.constant 0 : index
    %23 = vector.load %arg9[%c2, %c0_18, %c0_19] : memref<4x2x128xf32, #tpu.memory_space<vmem>>, vector<1x2x128xf32>
    %24 = vector.shape_cast %23 : vector<1x2x128xf32> to vector<2x128xf32>
    %c0_20 = arith.constant 0 : index
    %c0_21 = arith.constant 0 : index
    %25 = vector.load %arg4[%c0_20, %c0_21] : memref<2x256xf32, #tpu.memory_space<vmem>>, vector<2x256xf32>
    %26 = arith.truncf %25 : vector<2x256xf32> to vector<2x256xbf16>
    %cst_22 = arith.constant dense<0.000000e+00> : vector<2x128xf32>
    %27 = tpu.matmul %26, %4, %cst_22 {dimension_numbers = #tpu.dot_dimension_numbers<[1], [0], [0], [1], [0, 0, 1, 1], [], []>} : vector<2x256xbf16>, vector<256x128xbf16>, vector<2x128xf32> -> vector<2x128xf32>
    %28 = arith.addf %24, %27 : vector<2x128xf32>
    %c2_23 = arith.constant 2 : index
    %c0_24 = arith.constant 0 : index
    %c0_25 = arith.constant 0 : index
    %29 = vector.load %arg9[%c2_23, %c0_24, %c0_25] : memref<4x2x128xf32, #tpu.memory_space<vmem>>, vector<1x2x128xf32>
    %30 = vector.shape_cast %29 : vector<1x2x128xf32> to vector<2x128xf32>
    %31 = vector.shape_cast %28 : vector<2x128xf32> to vector<1x2x128xf32>
    tpu.vector_store %arg9[%c2_23, %c0_24, %c0_25], %31 {strides = array<i32>} : memref<4x2x128xf32, #tpu.memory_space<vmem>>, vector<1x2x128xf32>,
    %c3 = arith.constant 3 : index
    %c0_26 = arith.constant 0 : index
    %c0_27 = arith.constant 0 : index
    %32 = vector.load %arg9[%c3, %c0_26, %c0_27] : memref<4x2x128xf32, #tpu.memory_space<vmem>>, vector<1x2x128xf32>
    %33 = vector.shape_cast %32 : vector<1x2x128xf32> to vector<2x128xf32>
    %c0_28 = arith.constant 0 : index
    %c0_29 = arith.constant 0 : index
    %34 = vector.load %arg5[%c0_28, %c0_29] : memref<2x256xf32, #tpu.memory_space<vmem>>, vector<2x256xf32>
    %35 = arith.truncf %34 : vector<2x256xf32> to vector<2x256xbf16>
    %cst_30 = arith.constant dense<0.000000e+00> : vector<2x128xf32>
    %36 = tpu.matmul %35, %4, %cst_30 {dimension_numbers = #tpu.dot_dimension_numbers<[1], [0], [0], [1], [0, 0, 1, 1], [], []>} : vector<2x256xbf16>, vector<256x128xbf16>, vector<2x128xf32> -> vector<2x128xf32>
    %37 = arith.addf %33, %36 : vector<2x128xf32>
    %c3_31 = arith.constant 3 : index
    %c0_32 = arith.constant 0 : index
    %c0_33 = arith.constant 0 : index
    %38 = vector.load %arg9[%c3_31, %c0_32, %c0_33] : memref<4x2x128xf32, #tpu.memory_space<vmem>>, vector<1x2x128xf32>
    %39 = vector.shape_cast %38 : vector<1x2x128xf32> to vector<2x128xf32>
    %40 = vector.shape_cast %37 : vector<2x128xf32> to vector<1x2x128xf32>
    tpu.vector_store %arg9[%c3_31, %c0_32, %c0_33], %40 {strides = array<i32>} : memref<4x2x128xf32, #tpu.memory_space<vmem>>, vector<1x2x128xf32>,
    %c3_i32 = arith.constant 3 : i32
    %41 = arith.cmpi eq, %arg1, %c3_i32 : i32
    %42 = arith.extui %41 : i1 to i32
    %c0_i32_34 = arith.constant 0 : i32
    %43 = arith.cmpi ne, %42, %c0_i32_34 : i32
    scf.if %43 {
      %c0_35 = arith.constant 0 : index
      %c0_36 = arith.constant 0 : index
      %c0_37 = arith.constant 0 : index
      %44 = vector.load %arg9[%c0_35, %c0_36, %c0_37] : memref<4x2x128xf32, #tpu.memory_space<vmem>>, vector<1x2x128xf32>
      %45 = vector.shape_cast %44 : vector<1x2x128xf32> to vector<2x128xf32>
      %46 = arith.mulf %45, %45 : vector<2x128xf32>
      %cst_38 = arith.constant dense<0.000000e+00> : vector<2xf32>
      %47 = vector.multi_reduction <add>, %46, %cst_38 [1] : vector<2x128xf32> to vector<2xf32>
      %48 = vector.shape_cast %47 : vector<2xf32> to vector<2x1xf32>
      %c1_39 = arith.constant 1 : index
      %c0_40 = arith.constant 0 : index
      %c0_41 = arith.constant 0 : index
      %49 = vector.load %arg9[%c1_39, %c0_40, %c0_41] : memref<4x2x128xf32, #tpu.memory_space<vmem>>, vector<1x2x128xf32>
      %50 = vector.shape_cast %49 : vector<1x2x128xf32> to vector<2x128xf32>
      %51 = arith.mulf %50, %50 : vector<2x128xf32>
      %cst_42 = arith.constant dense<0.000000e+00> : vector<2xf32>
      %52 = vector.multi_reduction <add>, %51, %cst_42 [1] : vector<2x128xf32> to vector<2xf32>
      %53 = vector.shape_cast %52 : vector<2xf32> to vector<2x1xf32>
      %54 = arith.mulf %45, %50 : vector<2x128xf32>
      %cst_43 = arith.constant dense<0.000000e+00> : vector<2xf32>
      %55 = vector.multi_reduction <add>, %54, %cst_43 [1] : vector<2x128xf32> to vector<2xf32>
      %56 = vector.shape_cast %55 : vector<2xf32> to vector<2x1xf32>
      %c2_44 = arith.constant 2 : index
      %c0_45 = arith.constant 0 : index
      %c0_46 = arith.constant 0 : index
      %57 = vector.load %arg9[%c2_44, %c0_45, %c0_46] : memref<4x2x128xf32, #tpu.memory_space<vmem>>, vector<1x2x128xf32>
      %58 = vector.shape_cast %57 : vector<1x2x128xf32> to vector<2x128xf32>
      %59 = arith.mulf %58, %58 : vector<2x128xf32>
      %cst_47 = arith.constant dense<0.000000e+00> : vector<2xf32>
      %60 = vector.multi_reduction <add>, %59, %cst_47 [1] : vector<2x128xf32> to vector<2xf32>
      %61 = vector.shape_cast %60 : vector<2xf32> to vector<2x1xf32>
      %62 = arith.mulf %45, %58 : vector<2x128xf32>
      %cst_48 = arith.constant dense<0.000000e+00> : vector<2xf32>
      %63 = vector.multi_reduction <add>, %62, %cst_48 [1] : vector<2x128xf32> to vector<2xf32>
      %64 = vector.shape_cast %63 : vector<2xf32> to vector<2x1xf32>
      %c3_49 = arith.constant 3 : index
      %c0_50 = arith.constant 0 : index
      %c0_51 = arith.constant 0 : index
      %65 = vector.load %arg9[%c3_49, %c0_50, %c0_51] : memref<4x2x128xf32, #tpu.memory_space<vmem>>, vector<1x2x128xf32>
      %66 = vector.shape_cast %65 : vector<1x2x128xf32> to vector<2x128xf32>
      %67 = arith.mulf %66, %66 : vector<2x128xf32>
      %cst_52 = arith.constant dense<0.000000e+00> : vector<2xf32>
      %68 = vector.multi_reduction <add>, %67, %cst_52 [1] : vector<2x128xf32> to vector<2xf32>
      %69 = vector.shape_cast %68 : vector<2xf32> to vector<2x1xf32>
      %70 = arith.mulf %45, %66 : vector<2x128xf32>
      %cst_53 = arith.constant dense<0.000000e+00> : vector<2xf32>
      %71 = vector.multi_reduction <add>, %70, %cst_53 [1] : vector<2x128xf32> to vector<2xf32>
      %72 = vector.shape_cast %71 : vector<2xf32> to vector<2x1xf32>
      %73 = tpu.concatenate %48, %53, %61, %69 in 1 : vector<2x1xf32>, vector<2x1xf32>, vector<2x1xf32>, vector<2x1xf32> -> vector<2x4xf32>
      %c0_54 = arith.constant 0 : index
      %c0_55 = arith.constant 0 : index
      %c0_56 = arith.constant 0 : index
      %74 = vector.load %arg7[%c0_54, %c0_55, %c0_56] : memref<1x2x4xf32, #tpu.memory_space<vmem>>, vector<1x2x4xf32>
      %75 = vector.shape_cast %74 : vector<1x2x4xf32> to vector<2x4xf32>
      %76 = vector.shape_cast %73 : vector<2x4xf32> to vector<1x2x4xf32>
      tpu.vector_store %arg7[%c0_54, %c0_55, %c0_56], %76 {strides = array<i32>} : memref<1x2x4xf32, #tpu.memory_space<vmem>>, vector<1x2x4xf32>,
      %77 = tpu.concatenate %56, %64, %72 in 1 : vector<2x1xf32>, vector<2x1xf32>, vector<2x1xf32> -> vector<2x3xf32>
      %c0_57 = arith.constant 0 : index
      %c0_58 = arith.constant 0 : index
      %c0_59 = arith.constant 0 : index
      %78 = vector.load %arg8[%c0_57, %c0_58, %c0_59] : memref<1x2x3xf32, #tpu.memory_space<vmem>>, vector<1x2x3xf32>
      %79 = vector.shape_cast %78 : vector<1x2x3xf32> to vector<2x3xf32>
      %80 = vector.shape_cast %77 : vector<2x3xf32> to vector<1x2x3xf32>
      tpu.vector_store %arg8[%c0_57, %c0_58, %c0_59], %80 {strides = array<i32>} : memref<1x2x3xf32, #tpu.memory_space<vmem>>, vector<1x2x3xf32>,
    } else {
    }
    return
  }
  func.func @transform_0(%arg0: i32, %arg1: i32) -> (i32, i32) {
    %c0_i32 = arith.constant 0 : i32
    %c0_i32_0 = arith.constant 0 : i32
    return %c0_i32, %arg1 : i32, i32
  }
  func.func @transform_1(%arg0: i32, %arg1: i32) -> (i32, i32) {
    %c0_i32 = arith.constant 0 : i32
    %c0_i32_0 = arith.constant 0 : i32
    return %c0_i32, %arg1 : i32, i32
  }
  func.func @transform_2(%arg0: i32, %arg1: i32) -> (i32, i32) {
    %c0_i32 = arith.constant 0 : i32
    %c0_i32_0 = arith.constant 0 : i32
    return %c0_i32, %arg1 : i32, i32
  }
  func.func @transform_3(%arg0: i32, %arg1: i32) -> (i32, i32) {
    %c0_i32 = arith.constant 0 : i32
    %c0_i32_0 = arith.constant 0 : i32
    return %c0_i32, %arg1 : i32, i32
  }
  func.func @transform_4(%arg0: i32, %arg1: i32) -> (i32, i32) {
    %c0_i32 = arith.constant 0 : i32
    return %arg1, %arg0 : i32, i32
  }
  func.func @transform_5(%arg0: i32, %arg1: i32) -> (i32, i32, i32) {
    %c0_i32 = arith.constant 0 : i32
    %c0_i32_0 = arith.constant 0 : i32
    %c0_i32_1 = arith.constant 0 : i32
    return %arg0, %c0_i32, %c0_i32_0 : i32, i32, i32
  }
  func.func @transform_6(%arg0: i32, %arg1: i32) -> (i32, i32, i32) {
    %c0_i32 = arith.constant 0 : i32
    %c0_i32_0 = arith.constant 0 : i32
    %c0_i32_1 = arith.constant 0 : i32
    return %arg0, %c0_i32, %c0_i32_0 : i32, i32, i32
  }
}

</mosaic_0001>

<llo_original>
// kernel: tpu_custom_call.1
$region0: #{tpu_custom_call.1}
  #allocation0 [shape = 'u32[]', space=smem, size = 0x4, offset = 0x4, fixed_abs, tag = 'smem constant byte address 0x4 - core index']
  #allocation1 [shape = 'u32[144,128]{1,0:T(1,128)}', space=vmem, size = 0x12000, scoped, tag = 'internal scratch']
  #allocation2 [shape = 'f32[4,2,128]{2,1,0:T(2,128)}', space=vmem, size = 0x1000, scoped, tag = 'scratch operand']
  %s0 = inlined_call_operand.hbm [shape: f32[2,1024], index: 0, kind: input, shape index: {}]
  %s1 = inlined_call_operand.hbm [shape: f32[2,1024], index: 1, kind: input, shape index: {}]
  %s2 = inlined_call_operand.hbm [shape: f32[2,1024], index: 2, kind: input, shape index: {}]
  %s3 = inlined_call_operand.hbm [shape: f32[2,1024], index: 3, kind: input, shape index: {}]
  %s4 = inlined_call_operand.hbm [shape: f32[1024,128], index: 4, kind: input, shape index: {}]
  %s5 = inlined_call_operand.hbm [shape: f32[1,2,4], index: 5, kind: output, shape index: {0}]
  %s6 = inlined_call_operand.hbm [shape: f32[1,2,3], index: 6, kind: output, shape index: {1}]
  %7 = xla_tuple %s5, %s6
  %s8 = sld [smem:[#allocation0]]
  $region89: #{tpu_custom_call.1} parent=0
    _
  %s10 = ssub.s32 1, %s8
  %s11 = scalar_select 0, %s10, %s8
  $region1: #{tpu_custom_call.1} parent=0
    #allocation3 [shape = 'u8[4096]{0}', space=vmem, size = 0x1000, scoped, tag = 'input window, operand 0']
    #allocation4 [shape = 's32[2]{0}', space=sflag, size = 0x8, scoped, tag = 'scoped memory for tpu_custom_call.1']
    #allocation5 [shape = 's32[2]{0}', space=sflag, size = 0x8, scoped, tag = 'scoped memory for tpu_custom_call.1']
    #allocation6 [shape = 'u8[4096]{0}', space=vmem, size = 0x1000, scoped, tag = 'input window, operand 1']
    #allocation7 [shape = 's32[2]{0}', space=sflag, size = 0x8, scoped, tag = 'scoped memory for tpu_custom_call.1']
    #allocation8 [shape = 'u8[4096]{0}', space=vmem, size = 0x1000, scoped, tag = 'input window, operand 2']
    #allocation9 [shape = 'u8[4096]{0}', space=vmem, size = 0x1000, scoped, tag = 'input window, operand 3']
    #allocation10 [shape = 's32[2]{0}', space=sflag, size = 0x8, scoped, tag = 'scoped memory for tpu_custom_call.1']
    #allocation11 [shape = 'u8[262144]{0}', space=vmem, size = 0x40000, scoped, tag = 'input window, operand 4']
    #allocation12 [shape = 'u8[1024]{0}', space=vmem, size = 0x400, scoped, tag = 'output window, operand 0, single buffered']
    #allocation13 [shape = 'u8[1024]{0}', space=vmem, size = 0x400, scoped, tag = 'output window, operand 1, single buffered']
    #allocation14 [shape = 's32[1]{0}', space=sflag, size = 0x4, scoped, tag = 'scoped memory for tpu_custom_call.1']
    %12 = vsyncpa [#allocation4], 0
    %s13 = scalar_lea.sflag [#allocation4], 1
    %14 = vsyncpa %s13, 0
    %15 = vsyncpa [#allocation7], 0
    %s16 = scalar_lea.sflag [#allocation7], 1
    %17 = vsyncpa %s16, 0
    %18 = vsyncpa [#allocation10], 0
    %s19 = scalar_lea.sflag [#allocation10], 1
    %20 = vsyncpa %s19, 0
    %21 = vsyncpa [#allocation5], 0
    %22 = vsyncpa [#allocation14], 0
    loop: start=0, step=1, limit=6
    $region2: #{tpu_custom_call.1} parent=1 // loop_pre_header
      _
    $region3: #{tpu_custom_call.1} parent=1 // loop_header
      %s24 = sphi 0, %s28
      %p25 = scmp.ge.s32.totalorder %s24, 6
      %s31 = sphi 0, %s43
      %s32 = sphi 0, %s39
      %s33 = sphi 0, %s31
      %s34 = sphi 0, %s32
      %s35 = sphi 0, %s33
      %s36 = sphi 0, %s34
      %s46 = sphi 0, %s48
      %s49 = sphi 0, %s46
      %s50 = sphi 0, %s49
      %s66 = sphi 0, %s50
      %s72 = sphi 0, %s74
      %s75 = sphi 0, %s72
      %s76 = sphi 0, %s75
      %s92 = sphi 0, %s76
      %s98 = sphi 0, %s100
      %s101 = sphi 0, %s98
      %s102 = sphi 0, %s101
      %s118 = sphi 0, %s102
      %s124 = sphi 0, %s126
      %s127 = sphi 0, %s124
      %s128 = sphi 0, %s127
      %s144 = sphi 0, %s128
      %s152 = sphi 0, %s154
      %s155 = sphi 0, %s152
      %s156 = sphi 0, %s155
      %s172 = sphi 0, %s156
      %s178 = sphi 0, %s180
      %s181 = sphi 0, %s178
      %s182 = sphi 0, %s181
      %s198 = sphi 0, %s182
      %s204 = sphi 0, %s206
      %s207 = sphi 0, %s204
      %s208 = sphi 0, %s207
      %s224 = sphi 0, %s208
    $region4: #{tpu_custom_call.1} parent=1 // loop_header_branch
      %27 = sbr.rel (%p25) target = $region8
    $region5: #{tpu_custom_call.1} parent=1 // loop_body
      %s29 = ssub.s32 %s24, 1
      %s30 = ssub.s32 %s24, 2
      %s37 = sadd.s32 1, %s32
      %p38 = scmp.ge.s32.totalorder %s37, 4
      %s39 = scalar_select %p38, 0, %s37
      %s40 = sadd.s32 1, %s31
      %s41 = scalar_select %p38, %s40, %s31
      %p42 = scmp.ge.s32.totalorder %s41, 1
      %s43 = scalar_select %p42, 0, %s41
      %s44 = ssub.s32 %s32, %s39
      %p45 = scmp.eq.s32.totalorder %s44, 0
      %s47 = sadd.s32 %s46, 1
      %s48 = scalar_select %p45, %s46, %s47
      %p51 = pneg %p45
      %p52 = scmp.eq.s32.totalorder %s24, 3
      %p53 = por %p51, %p52
      %p54 = scmp.ne.s32.totalorder %s46, %s49
      %p55 = scmp.eq.s32.totalorder %s24, 0
      %p56 = por %p54, %p55
      %p57 = scmp.ne.s32.totalorder %s46, %s49
      %p58 = scmp.eq.s32.totalorder %s29, 3
      %p59 = por %p57, %p58
      %p60 = scmp.ne.s32.totalorder %s49, %s50
      %p61 = scmp.eq.s32.totalorder %s29, 0
      %p62 = por %p60, %p61
      %p63 = scmp.ne.s32.totalorder %s49, %s50
      %p64 = scmp.eq.s32.totalorder %s30, 3
      %p65 = por %p63, %p64
      %p67 = scmp.ne.s32.totalorder %s50, %s66
      %p68 = scmp.eq.s32.totalorder %s30, 0
      %p69 = por %p67, %p68
      %s70 = ssub.s32 %s32, %s39
      %p71 = scmp.eq.s32.totalorder %s70, 0
      %s73 = sadd.s32 %s72, 1
      %s74 = scalar_select %p71, %s72, %s73
      %p77 = pneg %p71
      %p78 = scmp.eq.s32.totalorder %s24, 3
      %p79 = por %p77, %p78
      %p80 = scmp.ne.s32.totalorder %s72, %s75
      %p81 = scmp.eq.s32.totalorder %s24, 0
      %p82 = por %p80, %p81
      %p83 = scmp.ne.s32.totalorder %s72, %s75
      %p84 = scmp.eq.s32.totalorder %s29, 3
      %p85 = por %p83, %p84
      %p86 = scmp.ne.s32.totalorder %s75, %s76
      %p87 = scmp.eq.s32.totalorder %s29, 0
      %p88 = por %p86, %p87
      %p89 = scmp.ne.s32.totalorder %s75, %s76
      %p90 = scmp.eq.s32.totalorder %s30, 3
      %p91 = por %p89, %p90
      %p93 = scmp.ne.s32.totalorder %s76, %s92
      %p94 = scmp.eq.s32.totalorder %s30, 0
      %p95 = por %p93, %p94
      %s96 = ssub.s32 %s32, %s39
      %p97 = scmp.eq.s32.totalorder %s96, 0
      %s99 = sadd.s32 %s98, 1
      %s100 = scalar_select %p97, %s98, %s99
      %p103 = pneg %p97
      %p104 = scmp.eq.s32.totalorder %s24, 3
      %p105 = por %p103, %p104
      %p106 = scmp.ne.s32.totalorder %s98, %s101
      %p107 = scmp.eq.s32.totalorder %s24, 0
      %p108 = por %p106, %p107
      %p109 = scmp.ne.s32.totalorder %s98, %s101
      %p110 = scmp.eq.s32.totalorder %s29, 3
      %p111 = por %p109, %p110
      %p112 = scmp.ne.s32.totalorder %s101, %s102
      %p113 = scmp.eq.s32.totalorder %s29, 0
      %p114 = por %p112, %p113
      %p115 = scmp.ne.s32.totalorder %s101, %s102
      %p116 = scmp.eq.s32.totalorder %s30, 3
      %p117 = por %p115, %p116
      %p119 = scmp.ne.s32.totalorder %s102, %s118
      %p120 = scmp.eq.s32.totalorder %s30, 0
      %p121 = por %p119, %p120
      %s122 = ssub.s32 %s32, %s39
      %p123 = scmp.eq.s32.totalorder %s122, 0
      %s125 = sadd.s32 %s124, 1
      %s126 = scalar_select %p123, %s124, %s125
      %p129 = pneg %p123
      %p130 = scmp.eq.s32.totalorder %s24, 3
      %p131 = por %p129, %p130
      %p132 = scmp.ne.s32.totalorder %s124, %s127
      %p133 = scmp.eq.s32.totalorder %s24, 0
      %p134 = por %p132, %p133
      %p135 = scmp.ne.s32.totalorder %s124, %s127
      %p136 = scmp.eq.s32.totalorder %s29, 3
      %p137 = por %p135, %p136
      %p138 = scmp.ne.s32.totalorder %s127, %s128
      %p139 = scmp.eq.s32.totalorder %s29, 0
      %p140 = por %p138, %p139
      %p141 = scmp.ne.s32.totalorder %s127, %s128
      %p142 = scmp.eq.s32.totalorder %s30, 3
      %p143 = por %p141, %p142
      %p145 = scmp.ne.s32.totalorder %s128, %s144
      %p146 = scmp.eq.s32.totalorder %s30, 0
      %p147 = por %p145, %p146
      %s148 = ssub.s32 %s32, %s39
      %s149 = ssub.s32 %s31, %s43
      %s150 = sor.u32 %s148, %s149
      %p151 = scmp.eq.s32.totalorder %s150, 0
      %s153 = sadd.s32 %s152, 1
      %s154 = scalar_select %p151, %s152, %s153
      %p157 = pneg %p151
      %p158 = scmp.eq.s32.totalorder %s24, 3
      %p159 = por %p157, %p158
      %p160 = scmp.ne.s32.totalorder %s152, %s155
      %p161 = scmp.eq.s32.totalorder %s24, 0
      %p162 = por %p160, %p161
      %p163 = scmp.ne.s32.totalorder %s152, %s155
      %p164 = scmp.eq.s32.totalorder %s29, 3
      %p165 = por %p163, %p164
      %p166 = scmp.ne.s32.totalorder %s155, %s156
      %p167 = scmp.eq.s32.totalorder %s29, 0
      %p168 = por %p166, %p167
      %p169 = scmp.ne.s32.totalorder %s155, %s156
      %p170 = scmp.eq.s32.totalorder %s30, 3
      %p171 = por %p169, %p170
      %p173 = scmp.ne.s32.totalorder %s156, %s172
      %p174 = scmp.eq.s32.totalorder %s30, 0
      %p175 = por %p173, %p174
      %s176 = ssub.s32 %s31, %s43
      %p177 = scmp.eq.s32.totalorder %s176, 0
      %s179 = sadd.s32 %s178, 1
      %s180 = scalar_select %p177, %s178, %s179
      %p183 = pneg %p177
      %p184 = scmp.eq.s32.totalorder %s24, 3
      %p185 = por %p183, %p184
      %p186 = scmp.ne.s32.totalorder %s178, %s181
      %p187 = scmp.eq.s32.totalorder %s24, 0
      %p188 = por %p186, %p187
      %p189 = scmp.ne.s32.totalorder %s178, %s181
      %p190 = scmp.eq.s32.totalorder %s29, 3
      %p191 = por %p189, %p190
      %p192 = scmp.ne.s32.totalorder %s181, %s182
      %p193 = scmp.eq.s32.totalorder %s29, 0
      %p194 = por %p192, %p193
      %p195 = scmp.ne.s32.totalorder %s181, %s182
      %p196 = scmp.eq.s32.totalorder %s30, 3
      %p197 = por %p195, %p196
      %p199 = scmp.ne.s32.totalorder %s182, %s198
      %p200 = scmp.eq.s32.totalorder %s30, 0
      %p201 = por %p199, %p200
      %s202 = ssub.s32 %s31, %s43
      %p203 = scmp.eq.s32.totalorder %s202, 0
      %s205 = sadd.s32 %s204, 1
      %s206 = scalar_select %p203, %s204, %s205
      %p209 = pneg %p203
      %p210 = scmp.eq.s32.totalorder %s24, 3
      %p211 = por %p209, %p210
      %p212 = scmp.ne.s32.totalorder %s204, %s207
      %p213 = scmp.eq.s32.totalorder %s24, 0
      %p214 = por %p212, %p213
      %p215 = scmp.ne.s32.totalorder %s204, %s207
      %p216 = scmp.eq.s32.totalorder %s29, 3
      %p217 = por %p215, %p216
      %p218 = scmp.ne.s32.totalorder %s207, %s208
      %p219 = scmp.eq.s32.totalorder %s29, 0
      %p220 = por %p218, %p219
      %p221 = scmp.ne.s32.totalorder %s207, %s208
      %p222 = scmp.eq.s32.totalorder %s30, 3
      %p223 = por %p221, %p222
      %p225 = scmp.ne.s32.totalorder %s208, %s224
      %p226 = scmp.eq.s32.totalorder %s30, 0
      %p227 = por %p225, %p226
      %p228 = scmp.le.s32.totalorder 1, %s24
      %p229 = scmp.lt.s32.totalorder %s24, 5
      %p230 = pnand %p228, %p229
      %p231 = pneg %p230
      // Predicated region
      $region9: #{tpu_custom_call.1} parent=5 // pred_check
        _
      $region10: #{tpu_custom_call.1} parent=5 // pred_check_branch
        %233 = sbr.rel (%p230) target = $region12
      $region11: #{tpu_custom_call.1} parent=5 // pred_region
        %s234 = ssub.s32 %s24, 1
      $region12: #{tpu_custom_call.1} parent=5 // pred_fallthru
        _
      %p235 = scmp.lt.s32.totalorder %s24, 4
      // Predicated region
      $region13: #{tpu_custom_call.1} parent=5 // pred_check
        %p236 = pneg %p235
      $region14: #{tpu_custom_call.1} parent=5 // pred_check_branch
        %238 = sbr.rel (%p236) target = $region16
      $region15: #{tpu_custom_call.1} parent=5 // pred_region
        // Predicated region
        $region17: #{tpu_custom_call.1} parent=15 // pred_check
          %p239 = pneg %p56
        $region18: #{tpu_custom_call.1} parent=15 // pred_check_branch
          %241 = sbr.rel (%p239) target = $region20
        $region19: #{tpu_custom_call.1} parent=15 // pred_region
          %s242 = sand.u32 %s46, 1
          %s243 = scalar_lea.sflag [#allocation4], %s242
          %s244 = sand.u32 %s46, 1
          %s245 = smul.addr %s244, 4
          %s246 = scalar_lea.vmem [#allocation3], %s245
          %s247 = smul.u32 2, %s32
          %s249 = ssub.s32 64, 64
          %250 = vsyncadd %s243, %s249
          %s251 = smul.addr %s247, 32
          %s252 = scalar_lea.hbm %s0, %s251
          %s254 = sshll.u32 %s246, 4
          %s255 = int_to_ptr.vmem [resolvable:$true] %s254
          %257 = dma.hbm_to_vmem [thread:$0]  %s252, 64, %s255, %s243
        $region20: #{tpu_custom_call.1} parent=15 // pred_fallthru
          _
        // Predicated region
        $region21: #{tpu_custom_call.1} parent=15 // pred_check
          %p258 = pneg %p82
        $region22: #{tpu_custom_call.1} parent=15 // pred_check_branch
          %260 = sbr.rel (%p258) target = $region24
        $region23: #{tpu_custom_call.1} parent=15 // pred_region
          %s261 = sand.u32 %s24, 1
          %s262 = scalar_lea.sflag [#allocation7], %s261
          %s263 = sand.u32 %s72, 1
          %s264 = smul.addr %s263, 4
          %s265 = scalar_lea.vmem [#allocation6], %s264
          %s266 = smul.u32 2, %s32
          %s268 = ssub.s32 64, 64
          %269 = vsyncadd %s262, %s268
          %s270 = smul.addr %s266, 32
          %s271 = scalar_lea.hbm %s1, %s270
          %s273 = sshll.u32 %s265, 4
          %s274 = int_to_ptr.vmem [resolvable:$true] %s273
          %276 = dma.hbm_to_vmem [thread:$0]  %s271, 64, %s274, %s262
        $region24: #{tpu_custom_call.1} parent=15 // pred_fallthru
          _
        // Predicated region
        $region25: #{tpu_custom_call.1} parent=15 // pred_check
          %p277 = pneg %p108
        $region26: #{tpu_custom_call.1} parent=15 // pred_check_branch
          %279 = sbr.rel (%p277) target = $region28
        $region27: #{tpu_custom_call.1} parent=15 // pred_region
          %s280 = sand.u32 %s24, 1
          %s281 = scalar_lea.sflag [#allocation7], %s280
          %s282 = sand.u32 %s98, 1
          %s283 = smul.addr %s282, 4
          %s284 = scalar_lea.vmem [#allocation8], %s283
          %s285 = smul.u32 2, %s32
          %s287 = ssub.s32 64, 64
          %288 = vsyncadd %s281, %s287
          %s289 = smul.addr %s285, 32
          %s290 = scalar_lea.hbm %s2, %s289
          %s292 = sshll.u32 %s284, 4
          %s293 = int_to_ptr.vmem [resolvable:$true] %s292
          %295 = dma.hbm_to_vmem [thread:$0]  %s290, 64, %s293, %s281
        $region28: #{tpu_custom_call.1} parent=15 // pred_fallthru
          _
        // Predicated region
        $region29: #{tpu_custom_call.1} parent=15 // pred_check
          %p296 = pneg %p134
        $region30: #{tpu_custom_call.1} parent=15 // pred_check_branch
          %298 = sbr.rel (%p296) target = $region32
        $region31: #{tpu_custom_call.1} parent=15 // pred_region
          %s299 = sand.u32 %s24, 1
          %s300 = scalar_lea.sflag [#allocation10], %s299
          %s301 = sand.u32 %s124, 1
          %s302 = smul.addr %s301, 4
          %s303 = scalar_lea.vmem [#allocation9], %s302
          %s304 = smul.u32 2, %s32
          %s306 = ssub.s32 64, 64
          %307 = vsyncadd %s300, %s306
          %s308 = smul.addr %s304, 32
          %s309 = scalar_lea.hbm %s3, %s308
          %s311 = sshll.u32 %s303, 4
          %s312 = int_to_ptr.vmem [resolvable:$true] %s311
          %314 = dma.hbm_to_vmem [thread:$0]  %s309, 64, %s312, %s300
        $region32: #{tpu_custom_call.1} parent=15 // pred_fallthru
          _
        // Predicated region
        $region33: #{tpu_custom_call.1} parent=15 // pred_check
          %p315 = pneg %p162
        $region34: #{tpu_custom_call.1} parent=15 // pred_check_branch
          %317 = sbr.rel (%p315) target = $region36
        $region35: #{tpu_custom_call.1} parent=15 // pred_region
          %s318 = sand.u32 %s24, 1
          %s319 = scalar_lea.sflag [#allocation10], %s318
          %s320 = sand.u32 %s152, 1
          %s321 = smul.addr %s320, 256
          %s322 = scalar_lea.vmem [#allocation11], %s321
          %s323 = smul.u32 32, %s32
          %s325 = ssub.s32 4096, 4096
          %326 = vsyncadd %s319, %s325
          %s327 = sadd.s32 %s31, %s323
          %s328 = smul.addr %s327, 128
          %s329 = scalar_lea.hbm %s4, %s328
          %s330 = sshll.u32 %s322, 4
          %s331 = int_to_ptr.vmem [resolvable:$true] %s330
          %336 = dma.hbm_to_vmem [thread:$0]  %s329, 4096, %s331, %s319, 128, 128, 8
        $region36: #{tpu_custom_call.1} parent=15 // pred_fallthru
          _
      $region16: #{tpu_custom_call.1} parent=5 // pred_fallthru
        _
      %p337 = scmp.le.s32.totalorder 1, %s24
      %p338 = scmp.lt.s32.totalorder %s24, 5
      %p339 = pnand %p337, %p338
      %p340 = pneg %p339
      // Predicated region
      $region37: #{tpu_custom_call.1} parent=5 // pred_check
        _
      $region38: #{tpu_custom_call.1} parent=5 // pred_check_branch
        %342 = sbr.rel (%p339) target = $region40
      $region39: #{tpu_custom_call.1} parent=5 // pred_region
        %s343 = ssub.s32 %s24, 1
        %s344 = sand.u32 %s49, 1
        %s345 = scalar_lea.sflag [#allocation4], %s344
        %s346 = sand.u32 %s49, 1
        %s347 = smul.addr %s346, 4
        %s348 = scalar_lea.vmem [#allocation3], %s347
        // Predicated region
        $region41: #{tpu_custom_call.1} parent=39 // pred_check
          %p349 = pneg %p62
        $region42: #{tpu_custom_call.1} parent=39 // pred_check_branch
          %351 = sbr.rel (%p349) target = $region44
        $region43: #{tpu_custom_call.1} parent=39 // pred_region
          %352 = dma.done %s345, 64
        $region44: #{tpu_custom_call.1} parent=39 // pred_fallthru
          _
        %s353 = sand.u32 %s29, 1
        %s354 = scalar_lea.sflag [#allocation7], %s353
        %s355 = sand.u32 %s75, 1
        %s356 = smul.addr %s355, 4
        %s357 = scalar_lea.vmem [#allocation6], %s356
        // Predicated region
        $region45: #{tpu_custom_call.1} parent=39 // pred_check
          %p358 = pneg %p88
        $region46: #{tpu_custom_call.1} parent=39 // pred_check_branch
          %360 = sbr.rel (%p358) target = $region48
        $region47: #{tpu_custom_call.1} parent=39 // pred_region
          %361 = dma.done %s354, 64
        $region48: #{tpu_custom_call.1} parent=39 // pred_fallthru
          _
        %s362 = sand.u32 %s29, 1
        %s363 = scalar_lea.sflag [#allocation7], %s362
        %s364 = sand.u32 %s101, 1
        %s365 = smul.addr %s364, 4
        %s366 = scalar_lea.vmem [#allocation8], %s365
        // Predicated region
        $region49: #{tpu_custom_call.1} parent=39 // pred_check
          %p367 = pneg %p114
        $region50: #{tpu_custom_call.1} parent=39 // pred_check_branch
          %369 = sbr.rel (%p367) target = $region52
        $region51: #{tpu_custom_call.1} parent=39 // pred_region
          %370 = dma.done %s363, 64
        $region52: #{tpu_custom_call.1} parent=39 // pred_fallthru
          _
        %s371 = sand.u32 %s29, 1
        %s372 = scalar_lea.sflag [#allocation10], %s371
        %s373 = sand.u32 %s127, 1
        %s374 = smul.addr %s373, 4
        %s375 = scalar_lea.vmem [#allocation9], %s374
        // Predicated region
        $region53: #{tpu_custom_call.1} parent=39 // pred_check
          %p376 = pneg %p140
        $region54: #{tpu_custom_call.1} parent=39 // pred_check_branch
          %378 = sbr.rel (%p376) target = $region56
        $region55: #{tpu_custom_call.1} parent=39 // pred_region
          %379 = dma.done %s372, 64
        $region56: #{tpu_custom_call.1} parent=39 // pred_fallthru
          _
        %s380 = sand.u32 %s29, 1
        %s381 = scalar_lea.sflag [#allocation10], %s380
        %s382 = sand.u32 %s155, 1
        %s383 = smul.addr %s382, 256
        %s384 = scalar_lea.vmem [#allocation11], %s383
        // Predicated region
        $region57: #{tpu_custom_call.1} parent=39 // pred_check
          %p385 = pneg %p168
        $region58: #{tpu_custom_call.1} parent=39 // pred_check_branch
          %387 = sbr.rel (%p385) target = $region60
        $region59: #{tpu_custom_call.1} parent=39 // pred_region
          %388 = dma.done %s381, 4096
        $region60: #{tpu_custom_call.1} parent=39 // pred_fallthru
          _
        %s389 = sand.u32 %s49, 1
        %s390 = scalar_lea.sflag [#allocation4], %s389
        %s391 = sand.u32 %s49, 1
        %s392 = smul.addr %s391, 4
        %s393 = scalar_lea.vmem [#allocation3], %s392
        %p394 = pneg %p62
        %p395 = pneg %p59
        %s396 = sand.u32 %s29, 1
        %s397 = scalar_lea.sflag [#allocation7], %s396
        %s398 = sand.u32 %s75, 1
        %s399 = smul.addr %s398, 4
        %s400 = scalar_lea.vmem [#allocation6], %s399
        %p401 = pneg %p88
        %p402 = pneg %p85
        %s403 = sand.u32 %s29, 1
        %s404 = scalar_lea.sflag [#allocation7], %s403
        %s405 = sand.u32 %s101, 1
        %s406 = smul.addr %s405, 4
        %s407 = scalar_lea.vmem [#allocation8], %s406
        %p408 = pneg %p114
        %p409 = pneg %p111
        %s410 = sand.u32 %s29, 1
        %s411 = scalar_lea.sflag [#allocation10], %s410
        %s412 = sand.u32 %s127, 1
        %s413 = smul.addr %s412, 4
        %s414 = scalar_lea.vmem [#allocation9], %s413
        %p415 = pneg %p140
        %p416 = pneg %p137
        %s417 = sand.u32 %s29, 1
        %s418 = scalar_lea.sflag [#allocation10], %s417
        %s419 = sand.u32 %s155, 1
        %s420 = smul.addr %s419, 256
        %s421 = scalar_lea.vmem [#allocation11], %s420
        %p422 = pneg %p168
        %p423 = pneg %p165
        %p424 = pneg %p194
        %p425 = pneg %p191
        %p426 = pneg %p220
        %p427 = pneg %p217
        %s428 = smul.u32 2, %s34
        %s429 = smul.u32 2, %s34
        %s430 = smul.u32 2, %s34
        %s431 = smul.u32 2, %s34
        %s432 = smul.u32 32, %s34
        %p434 = scmp.eq.s32.totalorder %s34, 0
        // Predicated region
        $region61: #{tpu_custom_call.1} parent=39 // pred_check
          %p435 = pneg %p434
        $region62: #{tpu_custom_call.1} parent=39 // pred_check_branch
          %437 = sbr.rel (%p435) target = $region64
        $region63: #{tpu_custom_call.1} parent=39 // pred_region
          %438 = vst [vmem:[#allocation2] sm:$0x3] 0.0
          %439 = vst [vmem:[#allocation2 + $0x2] sm:$0x3] 0.0
          %440 = vst [vmem:[#allocation2 + $0x4] sm:$0x3] 0.0
          %441 = vst [vmem:[#allocation2 + $0x6] sm:$0x3] 0.0
        $region64: #{tpu_custom_call.1} parent=39 // pred_fallthru
          _
        %v442 = vld [vmem:[%s384] sm:$0xff]
        %v443 = vld [vmem:[%s384 + $0x8] sm:$0xff]
        %v444 = vld [vmem:[%s384 + $0x10] sm:$0xff]
        %v445 = vld [vmem:[%s384 + $0x18] sm:$0xff]
        %v446 = vld [vmem:[%s384 + $0x20] sm:$0xff]
        %v447 = vld [vmem:[%s384 + $0x28] sm:$0xff]
        %v448 = vld [vmem:[%s384 + $0x30] sm:$0xff]
        %v449 = vld [vmem:[%s384 + $0x38] sm:$0xff]
        %v450 = vld [vmem:[%s384 + $0x40] sm:$0xff]
        %v451 = vld [vmem:[%s384 + $0x48] sm:$0xff]
        %v452 = vld [vmem:[%s384 + $0x50] sm:$0xff]
        %v453 = vld [vmem:[%s384 + $0x58] sm:$0xff]
        %v454 = vld [vmem:[%s384 + $0x60] sm:$0xff]
        %v455 = vld [vmem:[%s384 + $0x68] sm:$0xff]
        %v456 = vld [vmem:[%s384 + $0x70] sm:$0xff]
        %v457 = vld [vmem:[%s384 + $0x78] sm:$0xff]
        %v458 = vld [vmem:[%s384 + $0x80] sm:$0xff]
        %v459 = vld [vmem:[%s384 + $0x88] sm:$0xff]
        %v460 = vld [vmem:[%s384 + $0x90] sm:$0xff]
        %v461 = vld [vmem:[%s384 + $0x98] sm:$0xff]
        %v462 = vld [vmem:[%s384 + $0xa0] sm:$0xff]
        %v463 = vld [vmem:[%s384 + $0xa8] sm:$0xff]
        %v464 = vld [vmem:[%s384 + $0xb0] sm:$0xff]
        %v465 = vld [vmem:[%s384 + $0xb8] sm:$0xff]
        %v466 = vld [vmem:[%s384 + $0xc0] sm:$0xff]
        %v467 = vld [vmem:[%s384 + $0xc8] sm:$0xff]
        %v468 = vld [vmem:[%s384 + $0xd0] sm:$0xff]
        %v469 = vld [vmem:[%s384 + $0xd8] sm:$0xff]
        %v470 = vld [vmem:[%s384 + $0xe0] sm:$0xff]
        %v471 = vld [vmem:[%s384 + $0xe8] sm:$0xff]
        %v472 = vld [vmem:[%s384 + $0xf0] sm:$0xff]
        %v473 = vld [vmem:[%s384 + $0xf8] sm:$0xff]
        %v474 = vpack.c.bf16 %v443, %v442
        %v475 = vpack.c.bf16 %v445, %v444
        %v476 = vpack.c.bf16 %v447, %v446
        %v477 = vpack.c.bf16 %v449, %v448
        %v478 = vpack.c.bf16 %v451, %v450
        %v479 = vpack.c.bf16 %v453, %v452
        %v480 = vpack.c.bf16 %v455, %v454
        %v481 = vpack.c.bf16 %v457, %v456
        %v482 = vpack.c.bf16 %v459, %v458
        %v483 = vpack.c.bf16 %v461, %v460
        %v484 = vpack.c.bf16 %v463, %v462
        %v485 = vpack.c.bf16 %v465, %v464
        %v486 = vpack.c.bf16 %v467, %v466
        %v487 = vpack.c.bf16 %v469, %v468
        %v488 = vpack.c.bf16 %v471, %v470
        %v489 = vpack.c.bf16 %v473, %v472
        %v490 = vld [vmem:[#allocation2] sm:$0x3]
        %v491 = vld [vmem:[%s348] sm:$0xf]
        %v494 = vunpack.c.l.s4 1983009808
        %v495 = vunpack.c.0.s8 %v494
        %v496 = vlaneseq
        %v497 = vshrl.u32 %v496, 7
        %v498 = vsub.s32 %v495, %v497
        %v499 = vrot.slane %v491, %v498
        %v500 = vcombine.high %v499, %v499
        %v503 = vpack.c.bf16 %v499, %v499
        %v504 = vpack.c.bf16 %v500, %v500
        %505 = vmatprep.subr.bf16.mxu0 0
        %506 = vmatpush1.bf16.msra.mxu0 %v481
        %507 = vmatprep.subr.bf16.mxu0 0
        %508 = vmatpush1.bf16.msra.mxu0 %v480
        %509 = vmatprep.subr.bf16.mxu0 0
        %510 = vmatpush1.bf16.msra.mxu0 %v479
        %511 = vmatprep.subr.bf16.mxu0 0
        %512 = vmatpush1.bf16.msra.mxu0 %v478
        %513 = vmatprep.subr.bf16.mxu0 0
        %514 = vmatpush1.bf16.msra.mxu0 %v477
        %515 = vmatprep.subr.bf16.mxu0 0
        %516 = vmatpush1.bf16.msra.mxu0 %v476
        %517 = vmatprep.subr.bf16.mxu0 0
        %518 = vmatpush1.bf16.msra.mxu0 %v475
        %519 = vmatprep.subr.bf16.mxu0 0
        %520 = vmatpush1.bf16.msra.mxu0 %v474
        %521 = vmatprep.subr.bf16.mxu0 0
        %522 = vmatpush2.bf16.msra.mxu0 %v489
        %523 = vmatprep.subr.bf16.mxu0 0
        %524 = vmatpush2.bf16.msra.mxu0 %v488
        %525 = vmatprep.subr.bf16.mxu0 0
        %526 = vmatpush2.bf16.msra.mxu0 %v487
        %527 = vmatprep.subr.bf16.mxu0 0
        %528 = vmatpush2.bf16.msra.mxu0 %v486
        %529 = vmatprep.subr.bf16.mxu0 0
        %530 = vmatpush2.bf16.msra.mxu0 %v485
        %531 = vmatprep.subr.bf16.mxu0 0
        %532 = vmatpush2.bf16.msra.mxu0 %v484
        %533 = vmatprep.subr.bf16.mxu0 0
        %534 = vmatpush2.bf16.msra.mxu0 %v483
        %535 = vmatprep.subr.bf16.mxu0 0
        %536 = vmatpush2.bf16.msra.mxu0 %v482
        %537 = vmatprep.mubr.bf16.mxu0 %v504
        %538 = vmatmul.mubr.bf16.gmra.mxu0 %v503
        %v539 = vpop.f32.mrf.mxu0
        %v540 = vadd.f32 0.0, %v539
        %v541 = vpop.f32.mrf.mxu0
        %v542 = vpop.f32.mrf.mxu0
        %v543 = vpop.f32.mrf.mxu0
        %544 = vdwg.mxu0
        %v545 = vadd.f32 %v490, %v540
        %546 = vst [vmem:[#allocation2] sm:$0x3] %v545
        %s547 = scalar_lea.vmem [#allocation2], 2
        %v548 = vld [vmem:[%s547] sm:$0x3]
        %v549 = vld [vmem:[%s357] sm:$0xf]
        %v552 = vunpack.c.l.s4 1983009808
        %v553 = vunpack.c.0.s8 %v552
        %v554 = vlaneseq
        %v555 = vshrl.u32 %v554, 7
        %v556 = vsub.s32 %v553, %v555
        %v557 = vrot.slane %v549, %v556
        %v558 = vcombine.high %v557, %v557
        %v561 = vpack.c.bf16 %v557, %v557
        %v562 = vpack.c.bf16 %v558, %v558
        %563 = vmatprep.subr.bf16.mxu0 0
        %564 = vmatpush1.bf16.msra.mxu0 %v481
        %565 = vmatprep.subr.bf16.mxu0 0
        %566 = vmatpush1.bf16.msra.mxu0 %v480
        %567 = vmatprep.subr.bf16.mxu0 0
        %568 = vmatpush1.bf16.msra.mxu0 %v479
        %569 = vmatprep.subr.bf16.mxu0 0
        %570 = vmatpush1.bf16.msra.mxu0 %v478
        %571 = vmatprep.subr.bf16.mxu0 0
        %572 = vmatpush1.bf16.msra.mxu0 %v477
        %573 = vmatprep.subr.bf16.mxu0 0
        %574 = vmatpush1.bf16.msra.mxu0 %v476
        %575 = vmatprep.subr.bf16.mxu0 0
        %576 = vmatpush1.bf16.msra.mxu0 %v475
        %577 = vmatprep.subr.bf16.mxu0 0
        %578 = vmatpush1.bf16.msra.mxu0 %v474
        %579 = vmatprep.subr.bf16.mxu0 0
        %580 = vmatpush2.bf16.msra.mxu0 %v489
        %581 = vmatprep.subr.bf16.mxu0 0
        %582 = vmatpush2.bf16.msra.mxu0 %v488
        %583 = vmatprep.subr.bf16.mxu0 0
        %584 = vmatpush2.bf16.msra.mxu0 %v487
        %585 = vmatprep.subr.bf16.mxu0 0
        %586 = vmatpush2.bf16.msra.mxu0 %v486
        %587 = vmatprep.subr.bf16.mxu0 0
        %588 = vmatpush2.bf16.msra.mxu0 %v485
        %589 = vmatprep.subr.bf16.mxu0 0
        %590 = vmatpush2.bf16.msra.mxu0 %v484
        %591 = vmatprep.subr.bf16.mxu0 0
        %592 = vmatpush2.bf16.msra.mxu0 %v483
        %593 = vmatprep.subr.bf16.mxu0 0
        %594 = vmatpush2.bf16.msra.mxu0 %v482
        %595 = vmatprep.mubr.bf16.mxu0 %v562
        %596 = vmatmul.mubr.bf16.gmra.mxu0 %v561
        %v597 = vpop.f32.mrf.mxu0
        %v598 = vadd.f32 0.0, %v597
        %v599 = vpop.f32.mrf.mxu0
        %v600 = vpop.f32.mrf.mxu0
        %v601 = vpop.f32.mrf.mxu0
        %602 = vdwg.mxu0
        %v603 = vadd.f32 %v548, %v598
        %604 = vst [vmem:[%s547] sm:$0x3] %v603
        %s605 = scalar_lea.vmem [#allocation2], 4
        %v606 = vld [vmem:[%s605] sm:$0x3]
        %v607 = vld [vmem:[%s366] sm:$0xf]
        %v610 = vunpack.c.l.s4 1983009808
        %v611 = vunpack.c.0.s8 %v610
        %v612 = vlaneseq
        %v613 = vshrl.u32 %v612, 7
        %v614 = vsub.s32 %v611, %v613
        %v615 = vrot.slane %v607, %v614
        %v616 = vcombine.high %v615, %v615
        %v619 = vpack.c.bf16 %v615, %v615
        %v620 = vpack.c.bf16 %v616, %v616
        %621 = vmatprep.subr.bf16.mxu0 0
        %622 = vmatpush1.bf16.msra.mxu0 %v481
        %623 = vmatprep.subr.bf16.mxu0 0
        %624 = vmatpush1.bf16.msra.mxu0 %v480
        %625 = vmatprep.subr.bf16.mxu0 0
        %626 = vmatpush1.bf16.msra.mxu0 %v479
        %627 = vmatprep.subr.bf16.mxu0 0
        %628 = vmatpush1.bf16.msra.mxu0 %v478
        %629 = vmatprep.subr.bf16.mxu0 0
        %630 = vmatpush1.bf16.msra.mxu0 %v477
        %631 = vmatprep.subr.bf16.mxu0 0
        %632 = vmatpush1.bf16.msra.mxu0 %v476
        %633 = vmatprep.subr.bf16.mxu0 0
        %634 = vmatpush1.bf16.msra.mxu0 %v475
        %635 = vmatprep.subr.bf16.mxu0 0
        %636 = vmatpush1.bf16.msra.mxu0 %v474
        %637 = vmatprep.subr.bf16.mxu0 0
        %638 = vmatpush2.bf16.msra.mxu0 %v489
        %639 = vmatprep.subr.bf16.mxu0 0
        %640 = vmatpush2.bf16.msra.mxu0 %v488
        %641 = vmatprep.subr.bf16.mxu0 0
        %642 = vmatpush2.bf16.msra.mxu0 %v487
        %643 = vmatprep.subr.bf16.mxu0 0
        %644 = vmatpush2.bf16.msra.mxu0 %v486
        %645 = vmatprep.subr.bf16.mxu0 0
        %646 = vmatpush2.bf16.msra.mxu0 %v485
        %647 = vmatprep.subr.bf16.mxu0 0
        %648 = vmatpush2.bf16.msra.mxu0 %v484
        %649 = vmatprep.subr.bf16.mxu0 0
        %650 = vmatpush2.bf16.msra.mxu0 %v483
        %651 = vmatprep.subr.bf16.mxu0 0
        %652 = vmatpush2.bf16.msra.mxu0 %v482
        %653 = vmatprep.mubr.bf16.mxu0 %v620
        %654 = vmatmul.mubr.bf16.gmra.mxu0 %v619
        %v655 = vpop.f32.mrf.mxu0
        %v656 = vadd.f32 0.0, %v655
        %v657 = vpop.f32.mrf.mxu0
        %v658 = vpop.f32.mrf.mxu0
        %v659 = vpop.f32.mrf.mxu0
        %660 = vdwg.mxu0
        %v661 = vadd.f32 %v606, %v656
        %662 = vst [vmem:[%s605] sm:$0x3] %v661
        %s663 = scalar_lea.vmem [#allocation2], 6
        %v664 = vld [vmem:[%s663] sm:$0x3]
        %v665 = vld [vmem:[%s375] sm:$0xf]
        %v668 = vunpack.c.l.s4 1983009808
        %v669 = vunpack.c.0.s8 %v668
        %v670 = vlaneseq
        %v671 = vshrl.u32 %v670, 7
        %v672 = vsub.s32 %v669, %v671
        %v673 = vrot.slane %v665, %v672
        %v674 = vcombine.high %v673, %v673
        %v677 = vpack.c.bf16 %v673, %v673
        %v678 = vpack.c.bf16 %v674, %v674
        %679 = vmatprep.subr.bf16.mxu0 0
        %680 = vmatpush1.bf16.msra.mxu0 %v481
        %681 = vmatprep.subr.bf16.mxu0 0
        %682 = vmatpush1.bf16.msra.mxu0 %v480
        %683 = vmatprep.subr.bf16.mxu0 0
        %684 = vmatpush1.bf16.msra.mxu0 %v479
        %685 = vmatprep.subr.bf16.mxu0 0
        %686 = vmatpush1.bf16.msra.mxu0 %v478
        %687 = vmatprep.subr.bf16.mxu0 0
        %688 = vmatpush1.bf16.msra.mxu0 %v477
        %689 = vmatprep.subr.bf16.mxu0 0
        %690 = vmatpush1.bf16.msra.mxu0 %v476
        %691 = vmatprep.subr.bf16.mxu0 0
        %692 = vmatpush1.bf16.msra.mxu0 %v475
        %693 = vmatprep.subr.bf16.mxu0 0
        %694 = vmatpush1.bf16.msra.mxu0 %v474
        %695 = vmatprep.subr.bf16.mxu0 0
        %696 = vmatpush2.bf16.msra.mxu0 %v489
        %697 = vmatprep.subr.bf16.mxu0 0
        %698 = vmatpush2.bf16.msra.mxu0 %v488
        %699 = vmatprep.subr.bf16.mxu0 0
        %700 = vmatpush2.bf16.msra.mxu0 %v487
        %701 = vmatprep.subr.bf16.mxu0 0
        %702 = vmatpush2.bf16.msra.mxu0 %v486
        %703 = vmatprep.subr.bf16.mxu0 0
        %704 = vmatpush2.bf16.msra.mxu0 %v485
        %705 = vmatprep.subr.bf16.mxu0 0
        %706 = vmatpush2.bf16.msra.mxu0 %v484
        %707 = vmatprep.subr.bf16.mxu0 0
        %708 = vmatpush2.bf16.msra.mxu0 %v483
        %709 = vmatprep.subr.bf16.mxu0 0
        %710 = vmatpush2.bf16.msra.mxu0 %v482
        %711 = vmatprep.mubr.bf16.mxu0 %v678
        %712 = vmatmul.mubr.bf16.gmra.mxu0 %v677
        %v713 = vpop.f32.mrf.mxu0
        %v714 = vadd.f32 0.0, %v713
        %v715 = vpop.f32.mrf.mxu0
        %v716 = vpop.f32.mrf.mxu0
        %v717 = vpop.f32.mrf.mxu0
        %718 = vdwg.mxu0
        %v719 = vadd.f32 %v664, %v714
        %720 = vst [vmem:[%s663] sm:$0x3] %v719
        %p721 = scmp.eq.s32.totalorder %s34, 3
        // Predicated region
        $region65: #{tpu_custom_call.1} parent=39 // pred_check
          %p722 = pneg %p721
        $region66: #{tpu_custom_call.1} parent=39 // pred_check_branch
          %724 = sbr.rel (%p722) target = $region68
        $region67: #{tpu_custom_call.1} parent=39 // pred_region
          %v725 = vld [vmem:[#allocation2] sm:$0x3]
          %v726 = vmul.f32 %v725, %v725
          %vm727 = vcmask 1041408
          %v728 = vsel %vm727, %v726, 0.0
          %729 = vadd.xlane.f32.xlu0 %v728
          %v730 = vpop.xlane.xlu0 %729
          %v731 = vld [vmem:[%s547] sm:$0x3]
          %v732 = vmul.f32 %v731, %v731
          %v733 = vsel %vm727, %v732, 0.0
          %734 = vadd.xlane.f32.xlu0 %v733
          %v735 = vpop.xlane.xlu0 %734
          %v736 = vmul.f32 %v725, %v731
          %v737 = vsel %vm727, %v736, 0.0
          %738 = vadd.xlane.f32.xlu0 %v737
          %v739 = vpop.xlane.xlu0 %738
          %v740 = vld [vmem:[%s605] sm:$0x3]
          %v741 = vmul.f32 %v740, %v740
          %v742 = vsel %vm727, %v741, 0.0
          %743 = vadd.xlane.f32.xlu0 %v742
          %v744 = vpop.xlane.xlu0 %743
          %v745 = vmul.f32 %v725, %v740
          %v746 = vsel %vm727, %v745, 0.0
          %747 = vadd.xlane.f32.xlu0 %v746
          %v748 = vpop.xlane.xlu0 %747
          %v749 = vld [vmem:[%s663] sm:$0x3]
          %v750 = vmul.f32 %v749, %v749
          %v751 = vsel %vm727, %v750, 0.0
          %752 = vadd.xlane.f32.xlu0 %v751
          %v753 = vpop.xlane.xlu0 %752
          %v754 = vmul.f32 %v725, %v749
          %v755 = vsel %vm727, %v754, 0.0
          %756 = vadd.xlane.f32.xlu0 %v755
          %v757 = vpop.xlane.xlu0 %756
          %vm758 = vcmask 7168
          %v759 = vsel %vm758, %v730, %v735
          %vm760 = vcmask 15360
          %v761 = vsel %vm760, %v759, %v744
          %vm762 = vcmask 23552
          %v763 = vsel %vm762, %v761, %v753
          %vm764 = vcmask 25600
          %765 = vst.msk [vmem:[#allocation12] sm:$0x3] %vm764, %v763
          %v766 = vsel %vm758, %v739, %v748
          %v767 = vsel %vm760, %v766, %v757
          %vm768 = vcmask 17408
          %769 = vst.msk [vmem:[#allocation13] sm:$0x3] %vm768, %v767
        $region68: #{tpu_custom_call.1} parent=39 // pred_fallthru
          _
        // Predicated region
        $region69: #{tpu_custom_call.1} parent=39 // pred_check
          %p770 = pneg %p191
        $region70: #{tpu_custom_call.1} parent=39 // pred_check_branch
          %772 = sbr.rel (%p770) target = $region72
        $region71: #{tpu_custom_call.1} parent=39 // pred_region
          %s774 = ssub.s32 32, 32
          %775 = vsyncadd [#allocation5], %s774
          %s776 = smul.addr %s33, 32
          %s777 = scalar_lea.hbm %s5, %s776
          %s779 = sshll.u32 [#allocation12], 4
          %s780 = int_to_ptr.vmem [resolvable:$true] %s779
          %782 = dma.vmem_to_hbm [thread:$0]  %s780, 32, %s777, [#allocation5]
        $region72: #{tpu_custom_call.1} parent=39 // pred_fallthru
          _
        // Predicated region
        $region73: #{tpu_custom_call.1} parent=39 // pred_check
          %p783 = pneg %p217
        $region74: #{tpu_custom_call.1} parent=39 // pred_check_branch
          %785 = sbr.rel (%p783) target = $region76
        $region75: #{tpu_custom_call.1} parent=39 // pred_region
          %s787 = ssub.s32 32, 32
          %788 = vsyncadd [#allocation14], %s787
          %s789 = smul.addr %s33, 32
          %s790 = scalar_lea.hbm %s6, %s789
          %s792 = sshll.u32 [#allocation13], 4
          %s793 = int_to_ptr.vmem [resolvable:$true] %s792
          %795 = dma.vmem_to_hbm [thread:$0]  %s793, 32, %s790, [#allocation14]
        $region76: #{tpu_custom_call.1} parent=39 // pred_fallthru
          _
        // Predicated region
        $region77: #{tpu_custom_call.1} parent=39 // pred_check
          %p796 = pneg %p191
        $region78: #{tpu_custom_call.1} parent=39 // pred_check_branch
          %798 = sbr.rel (%p796) target = $region80
        $region79: #{tpu_custom_call.1} parent=39 // pred_region
          %799 = dma.done [#allocation5], 32
        $region80: #{tpu_custom_call.1} parent=39 // pred_fallthru
          _
        // Predicated region
        $region81: #{tpu_custom_call.1} parent=39 // pred_check
          %p800 = pneg %p217
        $region82: #{tpu_custom_call.1} parent=39 // pred_check_branch
          %802 = sbr.rel (%p800) target = $region84
        $region83: #{tpu_custom_call.1} parent=39 // pred_region
          %803 = dma.done [#allocation14], 32
        $region84: #{tpu_custom_call.1} parent=39 // pred_fallthru
          _
      $region40: #{tpu_custom_call.1} parent=5 // pred_fallthru
        _
      %p804 = scmp.le.s32.totalorder 2, %s24
      // Predicated region
      $region85: #{tpu_custom_call.1} parent=5 // pred_check
        %p805 = pneg %p804
      $region86: #{tpu_custom_call.1} parent=5 // pred_check_branch
        %807 = sbr.rel (%p805) target = $region88
      $region87: #{tpu_custom_call.1} parent=5 // pred_region
        %s808 = ssub.s32 %s24, 2
      $region88: #{tpu_custom_call.1} parent=5 // pred_fallthru
        _
    $region6: #{tpu_custom_call.1} parent=1 // loop_footer
      %s28 = sadd.s32 1, %s24
    $region7: #{tpu_custom_call.1} parent=1 // loop_footer_branch
      %23 = sbr.rel target = $region3
    $region8: #{tpu_custom_call.1} parent=1 // loop_exit
      _
    %809 = vsyncpa [#allocation4], 1
    %s810 = scalar_lea.sflag [#allocation4], 1
    %811 = vsyncpa %s810, 1
    %812 = vsyncpa [#allocation7], 1
    %s813 = scalar_lea.sflag [#allocation7], 1
    %814 = vsyncpa %s813, 1
    %815 = vsyncpa [#allocation10], 1
    %s816 = scalar_lea.sflag [#allocation10], 1
    %817 = vsyncpa %s816, 1
    %818 = vsyncpa [#allocation5], 1
    %s819 = scalar_lea.sflag [#allocation5], 1
    %820 = vsyncpa %s819, 1
    %821 = vsyncpa [#allocation14], 1

</llo_original>
